<compile_context>
chip_gen: v7x
topology: tpu7x:2x2x1
jax: 0.10.0
libtpu: 0.0.40
codegen_flags: <defaults>
</compile_context>

<pallas_src>
import jax
import jax.numpy as jnp
from jax import lax
from jax.experimental import pallas as pl
from jax.experimental.pallas import tpu as pltpu


def _round_up(x: int, m: int) -> int:
    return ((x + m - 1) // m) * m


def _cdiv(a: int, b: int) -> int:
    return (a + b - 1) // b


_ONEHOT_VMEM_BUDGET = 4 << 20        # bytes of one-hot scratch per grid step
_RESIDENT_TABLE_BUDGET = 12 << 20    # bytes for the VMEM-resident (widened) table


def _spk_embedding_kernel(idx_ref, table_ref, out_ref):
    # idx_ref:   (TB, P)             int32  (VMEM).  Column p holds the speaker
    #                                id for packed lane-slot p of each row.
    # table_ref: (P*num_spk_p, L)    table (block-diagonal for P > 1),
    #                                VMEM-resident across all grid steps.
    # out_ref:   (TB, L)             lane-dense output tile (L multiple of 128).
    idx = idx_ref[...]
    tb, p_pack = idx.shape
    num_spk_p = table_ref.shape[0] // p_pack

    iota = lax.broadcasted_iota(jnp.int32, (tb, num_spk_p), 1)
    pieces = [
        (iota == idx[:, p:p + 1]).astype(table_ref.dtype) for p in range(p_pack)
    ]
    one_hot = pieces[0] if p_pack == 1 else jnp.concatenate(pieces, axis=1)

    # Gather as an MXU matmul: exact, since each one-hot row selects exactly
    # one table row per packed slot (disjoint lane blocks).
    out_ref[...] = jnp.dot(
        one_hot, table_ref[...], preferred_element_type=jnp.float32
    ).astype(out_ref.dtype)


def _pallas_gather(inds_p, wide_table, *, p_pack, num_spk_p, rows_p, tb, out_dtype):
    lane_w = wide_table.shape[1]
    itemsize = jnp.dtype(out_dtype).itemsize
    grid = (rows_p // tb,)

    # Rough VMEM need: double-buffered resident table + in/out tiles + one-hot.
    vmem_need = (
        2 * wide_table.size * jnp.dtype(wide_table.dtype).itemsize
        + 2 * tb * lane_w * itemsize
        + 2 * tb * p_pack * 4
        + tb * p_pack * num_spk_p * itemsize
        + (2 << 20)
    )
    cparams = dict(dimension_semantics=("parallel",))
    if vmem_need > (16 << 20):
        cparams["vmem_limit_bytes"] = int(min(vmem_need, 48 << 20))

    return pl.pallas_call(
        _spk_embedding_kernel,
        out_shape=jax.ShapeDtypeStruct((rows_p, lane_w), out_dtype),
        grid_spec=pl.GridSpec(
            grid=grid,
            in_specs=[
                # Per-step (TB, P) index tile (last dim equals full array dim).
                pl.BlockSpec((tb, p_pack), lambda b: (b, 0)),
                # Whole (widened) table resident in VMEM: constant index_map
                # -> fetched from HBM once and reused by every grid step.
                pl.BlockSpec(wide_table.shape, lambda b: (0, 0)),
            ],
            out_specs=pl.BlockSpec((tb, lane_w), lambda b: (b, 0)),
        ),
        compiler_params=pltpu.CompilerParams(**cparams),
    )(inds_p, wide_table)


class SPKEmbedding:
    """JAX/Pallas equivalent of the PyTorch SPKEmbedding module.

    All table padding / lane-packing is done ONCE here (hoisted out of the
    per-call path); __call__ only touches batch-sized index arrays before the
    kernel.
    """

    def __init__(self, num_spk, embd_dim, *, key=None, weight=None,
                 dtype=jnp.float32):
        if weight is None:
            key = jax.random.PRNGKey(0) if key is None else key
            # nn.Embedding default init: weight ~ N(0, 1).
            weight = jax.random.normal(key, (num_spk, embd_dim), dtype)
        self.weight = jnp.asarray(weight, dtype)
        dtype = self.weight.dtype
        self.num_spk = num_spk
        self.embd_dim = embd_dim

        # Contraction dim padded to 128: dense one-hot lanes, one clean MXU
        # pass, and covers every dtype's sublane packing (8/16/32).
        self.num_spk_p = _round_up(max(num_spk, 1), 128)
        itemsize = jnp.dtype(dtype).itemsize

        def wide_bytes(p_pack, lane_w):
            return p_pack * self.num_spk_p * lane_w * itemsize

        # Lane packing: fold P = 128 // embd_dim logical rows per output row
        # when that keeps the (block-diagonal) resident table within budget.
        p_pack, lane_w = 1, _round_up(max(embd_dim, 1), 128)
        if (embd_dim < 128 and 128 % embd_dim == 0 and (128 // embd_dim) <= 16
                and wide_bytes(128 // embd_dim, 128) <= _RESIDENT_TABLE_BUDGET):
            p_pack, lane_w = 128 // embd_dim, 128
        self.p_pack, self.lane_w = p_pack, lane_w

        self.use_pallas_table = wide_bytes(p_pack, lane_w) <= _RESIDENT_TABLE_BUDGET
        if self.use_pallas_table:
            wide = jnp.zeros((p_pack * self.num_spk_p, lane_w), dtype)
            for p in range(p_pack):
                wide = wide.at[
                    p * self.num_spk_p: p * self.num_spk_p + num_spk,
                    p * embd_dim: (p + 1) * embd_dim,
                ].set(self.weight)
            self.wide_table = wide
        else:
            # TODO(synk): manual DMA row-gather kernel for huge tables.
            self.wide_table = None

    def __call__(self, spk_inds, *, tb: int = 512, force_pallas: bool = False):
        spk_inds = jnp.asarray(spk_inds)
        orig_shape = spk_inds.shape
        d, P, L = self.embd_dim, self.p_pack, self.lane_w
        dtype = self.weight.dtype

        # Clamp (safety: PyTorch would raise on OOB ids) and flatten.
        inds = jnp.clip(spk_inds.reshape(-1).astype(jnp.int32), 0, self.num_spk - 1)
        batch = inds.shape[0]

        rows = _cdiv(max(batch, 1), P)          # packed output rows needed
        rows8 = _round_up(rows, 8)

        # --- tile-size selection -------------------------------------------
        tb = max(8, min(_round_up(tb, 8), 1024))
        # Bound the (TB, P*num_spk_p) one-hot scratch.
        max_tb_onehot = max(
            8, (_ONEHOT_VMEM_BUDGET // (P * self.num_spk_p * 4)) // 8 * 8)
        tb = min(tb, max_tb_onehot)
        # Ensure >= 2 grid steps when possible so "parallel" shards across
        # both v7x TensorCores.
        if rows8 >= 16:
            tb = min(tb, _round_up(_cdiv(rows8, 2), 8))
        tb = min(tb, rows8)
        rows_p = _round_up(rows8, tb)
        n_steps = rows_p // tb

        # --- fast path / fallback ------------------------------------------
        # Single-step problems are launch-overhead dominated; huge tables have
        # no resident-VMEM path yet.
        if (not self.use_pallas_table) or (n_steps == 1 and not force_pallas):
            out = jnp.take(self.weight, inds, axis=0)
            return out.reshape(orig_shape + (d,))

        # --- cheap per-call index pad/reshape -------------------------------
        inds_p = jnp.zeros((rows_p * P,), jnp.int32).at[:batch].set(inds)
        inds_p = inds_p.reshape(rows_p, P)

        out_packed = _pallas_gather(
            inds_p, self.wide_table, p_pack=P, num_spk_p=self.num_spk_p,
            rows_p=rows_p, tb=tb, out_dtype=dtype)

        # (rows_p, L) -> (rows_p*P, L//P) is a row-major-compatible unpack.
        out = out_packed.reshape(rows_p * P, L // P)
        if rows_p * P != batch or L // P != d:
            out = out[:batch, :d]          # skip entirely when nothing padded
        return out.reshape(orig_shape + (d,))


if __name__ == "__main__":
    num_spk = 8
    embd_dim = 32
    batch = 2

    key = jax.random.PRNGKey(0)
    k_table, k_inds, k_inds2, k_inds3 = jax.random.split(key, 4)

    weight = jax.random.normal(k_table, (num_spk, embd_dim), dtype=jnp.float32)
    emb = SPKEmbedding(num_spk, embd_dim, weight=weight)

    spk_inds = jax.random.randint(k_inds, (batch,), 0, num_spk, dtype=jnp.int32)

    # Primary run: force the Pallas path so the kernel itself is exercised even
    # though this tiny batch would normally take the XLA-gather fast path.
    out = jax.block_until_ready(emb(spk_inds, force_pallas=True))
    ref = weight[spk_inds]
    assert out.shape == (batch, embd_dim)
    assert jnp.allclose(out, ref), "Pallas embedding lookup mismatch (packed)"

    # Auto path (single-step fast path).
    out_auto = jax.block_until_ready(emb(spk_inds))
    assert jnp.allclose(out_auto, ref)

    # Larger batch: multi-step grid, lane-packed output, auto Pallas path.
    inds2 = jax.random.randint(k_inds2, (300,), 0, num_spk, dtype=jnp.int32)
    out2 = jax.block_until_ready(emb(inds2))
    assert out2.shape == (300, embd_dim)
    assert jnp.allclose(out2, weight[inds2]), "mismatch (multi-step packed)"

    # embd_dim that does not divide 128 -> non-packed, lane-padded path.
    emb3 = SPKEmbedding(num_spk, 192, key=k_table)
    inds3 = jax.random.randint(k_inds3, (40,), 0, num_spk, dtype=jnp.int32)
    out3 = jax.block_until_ready(emb3(inds3, force_pallas=True))
    assert out3.shape == (40, 192)
    assert jnp.allclose(out3, emb3.weight[inds3]), "mismatch (non-packed)"

    print("KERNEL_OK")
</pallas_src>

<mosaic_0001>
module attributes {stable_mosaic.version = 11 : i64} {
  func.func @_spk_embedding_kernel(%arg0: i32, %arg1: memref<8x4xi32, #tpu.memory_space<vmem>>, %arg2: memref<512x128xf32, #tpu.memory_space<vmem>>, %arg3: memref<8x128xf32, #tpu.memory_space<vmem>>) attributes {dimension_semantics = [#tpu.dimension_semantics<parallel>], iteration_bounds = array<i64: 1>, scalar_prefetch = 0 : i64, scratch_operands = 0 : i64, tpu.core_type = #tpu.core_type<tc>, window_params = [{transform_indices = @transform_0, window_bounds = array<i64: 8, 4>}, {pipeline_mode = #tpu.pipeline_mode<synchronous>, transform_indices = @transform_1, window_bounds = array<i64: 512, 128>}, {transform_indices = @transform_2, window_bounds = array<i64: 8, 128>}]} {
    %c0 = arith.constant 0 : index
    %c0_0 = arith.constant 0 : index
    %0 = vector.load %arg1[%c0, %c0_0] : memref<8x4xi32, #tpu.memory_space<vmem>>, vector<8x4xi32>
    %1 = tpu.iota {dimensions = array<i32: 1>} : vector<8x128xi32>
    %2 = vector.extract_strided_slice %0 {offsets = [0, 0], sizes = [8, 1], strides = [1, 1]} : vector<8x4xi32> to vector<8x1xi32>
    %3 = vector.broadcast %2 : vector<8x1xi32> to vector<8x128xi32>
    %4 = arith.cmpi eq, %1, %3 : vector<8x128xi32>
    %5 = arith.extui %4 : vector<8x128xi1> to vector<8x128xi32>
    %6 = arith.sitofp %5 : vector<8x128xi32> to vector<8x128xf32>
    %7 = vector.extract_strided_slice %0 {offsets = [0, 1], sizes = [8, 1], strides = [1, 1]} : vector<8x4xi32> to vector<8x1xi32>
    %8 = vector.broadcast %7 : vector<8x1xi32> to vector<8x128xi32>
    %9 = arith.cmpi eq, %1, %8 : vector<8x128xi32>
    %10 = arith.extui %9 : vector<8x128xi1> to vector<8x128xi32>
    %11 = arith.sitofp %10 : vector<8x128xi32> to vector<8x128xf32>
    %12 = vector.extract_strided_slice %0 {offsets = [0, 2], sizes = [8, 1], strides = [1, 1]} : vector<8x4xi32> to vector<8x1xi32>
    %13 = vector.broadcast %12 : vector<8x1xi32> to vector<8x128xi32>
    %14 = arith.cmpi eq, %1, %13 : vector<8x128xi32>
    %15 = arith.extui %14 : vector<8x128xi1> to vector<8x128xi32>
    %16 = arith.sitofp %15 : vector<8x128xi32> to vector<8x128xf32>
    %17 = vector.extract_strided_slice %0 {offsets = [0, 3], sizes = [8, 1], strides = [1, 1]} : vector<8x4xi32> to vector<8x1xi32>
    %18 = vector.broadcast %17 : vector<8x1xi32> to vector<8x128xi32>
    %19 = arith.cmpi eq, %1, %18 : vector<8x128xi32>
    %20 = arith.extui %19 : vector<8x128xi1> to vector<8x128xi32>
    %21 = arith.sitofp %20 : vector<8x128xi32> to vector<8x128xf32>
    %22 = tpu.concatenate %6, %11, %16, %21 in 1 : vector<8x128xf32>, vector<8x128xf32>, vector<8x128xf32>, vector<8x128xf32> -> vector<8x512xf32>
    %c0_1 = arith.constant 0 : index
    %c0_2 = arith.constant 0 : index
    %23 = vector.load %arg2[%c0_1, %c0_2] : memref<512x128xf32, #tpu.memory_space<vmem>>, vector<512x128xf32>
    %cst = arith.constant dense<0.000000e+00> : vector<8x128xf32>
    %24 = tpu.matmul %22, %23, %cst {dimension_numbers = #tpu.dot_dimension_numbers<[1], [0], [0], [1], [0, 0, 1, 1], [], []>} : vector<8x512xf32>, vector<512x128xf32>, vector<8x128xf32> -> vector<8x128xf32>
    %c0_3 = arith.constant 0 : index
    %c0_4 = arith.constant 0 : index
    %25 = vector.load %arg3[%c0_3, %c0_4] : memref<8x128xf32, #tpu.memory_space<vmem>>, vector<8x128xf32>
    tpu.vector_store %arg3[%c0_3, %c0_4], %24 {strides = array<i32>} : memref<8x128xf32, #tpu.memory_space<vmem>>, vector<8x128xf32>,
    return
  }
  func.func @transform_0(%arg0: i32) -> (i32, i32) {
    %c0_i32 = arith.constant 0 : i32
    %c0_i32_0 = arith.constant 0 : i32
    return %arg0, %c0_i32 : i32, i32
  }
  func.func @transform_1(%arg0: i32) -> (i32, i32) {
    %c0_i32 = arith.constant 0 : i32
    %c0_i32_0 = arith.constant 0 : i32
    %c0_i32_1 = arith.constant 0 : i32
    return %c0_i32, %c0_i32_0 : i32, i32
  }
  func.func @transform_2(%arg0: i32) -> (i32, i32) {
    %c0_i32 = arith.constant 0 : i32
    %c0_i32_0 = arith.constant 0 : i32
    return %arg0, %c0_i32 : i32, i32
  }
}

</mosaic_0001>

<llo_original>
// kernel: tpu_custom_call.1
$region0: #{tpu_custom_call.1}
  #allocation0 [shape = 'u32[]', space=smem, size = 0x4, offset = 0x4, fixed_abs, tag = 'smem constant byte address 0x4 - core index']
  #allocation1 [shape = 'u32[144,128]{1,0:T(1,128)}', space=vmem, size = 0x12000, scoped, tag = 'internal scratch']
  %s0 = inlined_call_operand.vmem [shape: s32[8,4], index: 0, kind: input, shape index: {}]
  %s1 = inlined_call_operand.hbm [shape: f32[512,128], index: 1, kind: input, shape index: {}]
  %s2 = inlined_call_operand.hbm [shape: f32[8,128], index: 2, kind: output, shape index: {}]
  %s3 = sld [smem:[#allocation0]]
  $region22: #{tpu_custom_call.1} parent=0
    _
  %s5 = ssub.s32 1, %s3
  %s6 = scalar_select 0, %s5, %s3
  $region1: #{tpu_custom_call.1} parent=0
    #allocation2 [shape = 'u8[262144]{0}', space=vmem, size = 0x40000, scoped, tag = 'input window, operand 1, single buffered']
    #allocation3 [shape = 's32[1]{0}', space=sflag, size = 0x4, scoped, tag = 'scoped memory for tpu_custom_call.1']
    #allocation4 [shape = 's32[1]{0}', space=sflag, size = 0x4, scoped, tag = 'scoped memory for tpu_custom_call.1']
    #allocation5 [shape = 'u8[4096]{0}', space=vmem, size = 0x1000, scoped, tag = 'output window, operand 0, single buffered']
    %7 = vsyncpa [#allocation3], 0
    %8 = vsyncpa [#allocation4], 0
    // Predicated region
    $region2: #{tpu_custom_call.1} parent=1 // pred_check
      _
    $region3: #{tpu_custom_call.1} parent=1 // pred_check_branch
      %10 = sbr.rel (0) target = $region5
    $region4: #{tpu_custom_call.1} parent=1 // pred_region
      _
    $region5: #{tpu_custom_call.1} parent=1 // pred_fallthru
      _
    // Predicated region
    $region6: #{tpu_custom_call.1} parent=1 // pred_check
      _
    $region7: #{tpu_custom_call.1} parent=1 // pred_check_branch
      %12 = sbr.rel (0) target = $region9
    $region8: #{tpu_custom_call.1} parent=1 // pred_region
      %s14 = ssub.s32 8192, 8192
      %15 = vsyncadd [#allocation3], %s14
      %s16 = sshll.u32 [#allocation2], 4
      %s17 = int_to_ptr.vmem [resolvable:$true] %s16
      %22 = dma.hbm_to_vmem [thread:$0]  %s1, 8192, %s17, [#allocation3], 128, 128, 8
    $region9: #{tpu_custom_call.1} parent=1 // pred_fallthru
      _
    // Predicated region
    $region10: #{tpu_custom_call.1} parent=1 // pred_check
      _
    $region11: #{tpu_custom_call.1} parent=1 // pred_check_branch
      %24 = sbr.rel (0) target = $region13
    $region12: #{tpu_custom_call.1} parent=1 // pred_region
      %25 = dma.done [#allocation3], 8192
    $region13: #{tpu_custom_call.1} parent=1 // pred_fallthru
      _
    %v26 = vld [vmem:[%s0] sm:$0xff]
    %v27 = vlaneseq
    %v28 = vand.u32 %v27, 127
    %29 = vset.pattern.permute.xlu0 0
    %30 = vperm.xlu0 %29, %v26
    %v31 = vpop.permute.xlu0 %30
    %vm32 = vcmp.eq.s32.totalorder %v28, %v31
    %v33 = vsel %vm32, 1, 0
    %v34 = vcvt.s32.f32 %v33
    %35 = vset.pattern.permute.xlu0 1
    %36 = vperm.xlu0 %35, %v26
    %v37 = vpop.permute.xlu0 %36
    %vm38 = vcmp.eq.s32.totalorder %v28, %v37
    %v39 = vsel %vm38, 1, 0
    %v40 = vcvt.s32.f32 %v39
    %41 = vset.pattern.permute.xlu0 2
    %42 = vperm.xlu0 %41, %v26
    %v43 = vpop.permute.xlu0 %42
    %vm44 = vcmp.eq.s32.totalorder %v28, %v43
    %v45 = vsel %vm44, 1, 0
    %v46 = vcvt.s32.f32 %v45
    %47 = vset.pattern.permute.xlu0 3
    %48 = vperm.xlu0 %47, %v26
    %v49 = vpop.permute.xlu0 %48
    %vm50 = vcmp.eq.s32.totalorder %v28, %v49
    %v51 = vsel %vm50, 1, 0
    %v52 = vcvt.s32.f32 %v51
    %v53 = vld [vmem:[#allocation2] sm:$0xff]
    %v54 = vld [vmem:[#allocation2 + $0x8] sm:$0xff]
    %v55 = vld [vmem:[#allocation2 + $0x10] sm:$0xff]
    %v56 = vld [vmem:[#allocation2 + $0x18] sm:$0xff]
    %v57 = vld [vmem:[#allocation2 + $0x20] sm:$0xff]
    %v58 = vld [vmem:[#allocation2 + $0x28] sm:$0xff]
    %v59 = vld [vmem:[#allocation2 + $0x30] sm:$0xff]
    %v60 = vld [vmem:[#allocation2 + $0x38] sm:$0xff]
    %v61 = vld [vmem:[#allocation2 + $0x40] sm:$0xff]
    %v62 = vld [vmem:[#allocation2 + $0x48] sm:$0xff]
    %v63 = vld [vmem:[#allocation2 + $0x50] sm:$0xff]
    %v64 = vld [vmem:[#allocation2 + $0x58] sm:$0xff]
    %v65 = vld [vmem:[#allocation2 + $0x60] sm:$0xff]
    %v66 = vld [vmem:[#allocation2 + $0x68] sm:$0xff]
    %v67 = vld [vmem:[#allocation2 + $0x70] sm:$0xff]
    %v68 = vld [vmem:[#allocation2 + $0x78] sm:$0xff]
    %v69 = vld [vmem:[#allocation2 + $0x80] sm:$0xff]
    %v70 = vld [vmem:[#allocation2 + $0x88] sm:$0xff]
    %v71 = vld [vmem:[#allocation2 + $0x90] sm:$0xff]
    %v72 = vld [vmem:[#allocation2 + $0x98] sm:$0xff]
    %v73 = vld [vmem:[#allocation2 + $0xa0] sm:$0xff]
    %v74 = vld [vmem:[#allocation2 + $0xa8] sm:$0xff]
    %v75 = vld [vmem:[#allocation2 + $0xb0] sm:$0xff]
    %v76 = vld [vmem:[#allocation2 + $0xb8] sm:$0xff]
    %v77 = vld [vmem:[#allocation2 + $0xc0] sm:$0xff]
    %v78 = vld [vmem:[#allocation2 + $0xc8] sm:$0xff]
    %v79 = vld [vmem:[#allocation2 + $0xd0] sm:$0xff]
    %v80 = vld [vmem:[#allocation2 + $0xd8] sm:$0xff]
    %v81 = vld [vmem:[#allocation2 + $0xe0] sm:$0xff]
    %v82 = vld [vmem:[#allocation2 + $0xe8] sm:$0xff]
    %v83 = vld [vmem:[#allocation2 + $0xf0] sm:$0xff]
    %v84 = vld [vmem:[#allocation2 + $0xf8] sm:$0xff]
    %v85 = vld [vmem:[#allocation2 + $0x100] sm:$0xff]
    %v86 = vld [vmem:[#allocation2 + $0x108] sm:$0xff]
    %v87 = vld [vmem:[#allocation2 + $0x110] sm:$0xff]
    %v88 = vld [vmem:[#allocation2 + $0x118] sm:$0xff]
    %v89 = vld [vmem:[#allocation2 + $0x120] sm:$0xff]
    %v90 = vld [vmem:[#allocation2 + $0x128] sm:$0xff]
    %v91 = vld [vmem:[#allocation2 + $0x130] sm:$0xff]
    %v92 = vld [vmem:[#allocation2 + $0x138] sm:$0xff]
    %v93 = vld [vmem:[#allocation2 + $0x140] sm:$0xff]
    %v94 = vld [vmem:[#allocation2 + $0x148] sm:$0xff]
    %v95 = vld [vmem:[#allocation2 + $0x150] sm:$0xff]
    %v96 = vld [vmem:[#allocation2 + $0x158] sm:$0xff]
    %v97 = vld [vmem:[#allocation2 + $0x160] sm:$0xff]
    %v98 = vld [vmem:[#allocation2 + $0x168] sm:$0xff]
    %v99 = vld [vmem:[#allocation2 + $0x170] sm:$0xff]
    %v100 = vld [vmem:[#allocation2 + $0x178] sm:$0xff]
    %v101 = vld [vmem:[#allocation2 + $0x180] sm:$0xff]
    %v102 = vld [vmem:[#allocation2 + $0x188] sm:$0xff]
    %v103 = vld [vmem:[#allocation2 + $0x190] sm:$0xff]
    %v104 = vld [vmem:[#allocation2 + $0x198] sm:$0xff]
    %v105 = vld [vmem:[#allocation2 + $0x1a0] sm:$0xff]
    %v106 = vld [vmem:[#allocation2 + $0x1a8] sm:$0xff]
    %v107 = vld [vmem:[#allocation2 + $0x1b0] sm:$0xff]
    %v108 = vld [vmem:[#allocation2 + $0x1b8] sm:$0xff]
    %v109 = vld [vmem:[#allocation2 + $0x1c0] sm:$0xff]
    %v110 = vld [vmem:[#allocation2 + $0x1c8] sm:$0xff]
    %v111 = vld [vmem:[#allocation2 + $0x1d0] sm:$0xff]
    %v112 = vld [vmem:[#allocation2 + $0x1d8] sm:$0xff]
    %v113 = vld [vmem:[#allocation2 + $0x1e0] sm:$0xff]
    %v114 = vld [vmem:[#allocation2 + $0x1e8] sm:$0xff]
    %v115 = vld [vmem:[#allocation2 + $0x1f0] sm:$0xff]
    %v116 = vld [vmem:[#allocation2 + $0x1f8] sm:$0xff]
    %117 = vmatprep.subr.mxu0 0.0
    %118 = vmatpush1.msra.mxu0 %v53
    %119 = vmatprep.subr.mxu0 0.0
    %120 = vmatpush1.msra.mxu0 %v54
    %121 = vmatprep.subr.mxu0 0.0
    %122 = vmatpush1.msra.mxu0 %v55
    %123 = vmatprep.subr.mxu0 0.0
    %124 = vmatpush1.msra.mxu0 %v56
    %125 = vmatprep.subr.mxu0 0.0
    %126 = vmatpush1.msra.mxu0 %v57
    %127 = vmatprep.subr.mxu0 0.0
    %128 = vmatpush1.msra.mxu0 %v58
    %129 = vmatprep.subr.mxu0 0.0
    %130 = vmatpush1.msra.mxu0 %v59
    %131 = vmatprep.subr.mxu0 0.0
    %132 = vmatpush1.msra.mxu0 %v60
    %133 = vmatprep.subr.mxu0 0.0
    %134 = vmatpush1.msra.mxu0 %v61
    %135 = vmatprep.subr.mxu0 0.0
    %136 = vmatpush1.msra.mxu0 %v62
    %137 = vmatprep.subr.mxu0 0.0
    %138 = vmatpush1.msra.mxu0 %v63
    %139 = vmatprep.subr.mxu0 0.0
    %140 = vmatpush1.msra.mxu0 %v64
    %141 = vmatprep.subr.mxu0 0.0
    %142 = vmatpush1.msra.mxu0 %v65
    %143 = vmatprep.subr.mxu0 0.0
    %144 = vmatpush1.msra.mxu0 %v66
    %145 = vmatprep.subr.mxu0 0.0
    %146 = vmatpush1.msra.mxu0 %v67
    %147 = vmatprep.subr.mxu0 0.0
    %148 = vmatpush1.msra.mxu0 %v68
    %149 = vmatprep.subr.mxu0 0.0
    %150 = vmatpush1.msra.mxu0 %v69
    %151 = vmatprep.subr.mxu0 0.0
    %152 = vmatpush1.msra.mxu0 %v70
    %153 = vmatprep.subr.mxu0 0.0
    %154 = vmatpush1.msra.mxu0 %v71
    %155 = vmatprep.subr.mxu0 0.0
    %156 = vmatpush1.msra.mxu0 %v72
    %157 = vmatprep.subr.mxu0 0.0
    %158 = vmatpush1.msra.mxu0 %v73
    %159 = vmatprep.subr.mxu0 0.0
    %160 = vmatpush1.msra.mxu0 %v74
    %161 = vmatprep.subr.mxu0 0.0
    %162 = vmatpush1.msra.mxu0 %v75
    %163 = vmatprep.subr.mxu0 0.0
    %164 = vmatpush1.msra.mxu0 %v76
    %165 = vmatprep.subr.mxu0 0.0
    %166 = vmatpush1.msra.mxu0 %v77
    %167 = vmatprep.subr.mxu0 0.0
    %168 = vmatpush1.msra.mxu0 %v78
    %169 = vmatprep.subr.mxu0 0.0
    %170 = vmatpush1.msra.mxu0 %v79
    %171 = vmatprep.subr.mxu0 0.0
    %172 = vmatpush1.msra.mxu0 %v80
    %173 = vmatprep.subr.mxu0 0.0
    %174 = vmatpush1.msra.mxu0 %v81
    %175 = vmatprep.subr.mxu0 0.0
    %176 = vmatpush1.msra.mxu0 %v82
    %177 = vmatprep.subr.mxu0 0.0
    %178 = vmatpush1.msra.mxu0 %v83
    %179 = vmatprep.subr.mxu0 0.0
    %180 = vmatpush1.msra.mxu0 %v84
    %181 = vmatprep.mubr.f32.mxu0 %v40
    %182 = vmatmul.mubr.f32.gmra.mrb[0].mxu0 %v34
    %v183 = vpop.f32.mrb[0].mxu0
    %v184 = vadd.f32 0.0, %v183
    %v185 = vpop.f32.mrb[0].mxu0
    %186 = vdwg.mxu0
    %187 = vmatprep.subr.mxu0 0.0
    %188 = vmatpush1.msra.mxu0 %v85
    %189 = vmatprep.subr.mxu0 0.0
    %190 = vmatpush1.msra.mxu0 %v86
    %191 = vmatprep.subr.mxu0 0.0
    %192 = vmatpush1.msra.mxu0 %v87
    %193 = vmatprep.subr.mxu0 0.0
    %194 = vmatpush1.msra.mxu0 %v88
    %195 = vmatprep.subr.mxu0 0.0
    %196 = vmatpush1.msra.mxu0 %v89
    %197 = vmatprep.subr.mxu0 0.0
    %198 = vmatpush1.msra.mxu0 %v90
    %199 = vmatprep.subr.mxu0 0.0
    %200 = vmatpush1.msra.mxu0 %v91
    %201 = vmatprep.subr.mxu0 0.0
    %202 = vmatpush1.msra.mxu0 %v92
    %203 = vmatprep.subr.mxu0 0.0
    %204 = vmatpush1.msra.mxu0 %v93
    %205 = vmatprep.subr.mxu0 0.0
    %206 = vmatpush1.msra.mxu0 %v94
    %207 = vmatprep.subr.mxu0 0.0
    %208 = vmatpush1.msra.mxu0 %v95
    %209 = vmatprep.subr.mxu0 0.0
    %210 = vmatpush1.msra.mxu0 %v96
    %211 = vmatprep.subr.mxu0 0.0
    %212 = vmatpush1.msra.mxu0 %v97
    %213 = vmatprep.subr.mxu0 0.0
    %214 = vmatpush1.msra.mxu0 %v98
    %215 = vmatprep.subr.mxu0 0.0
    %216 = vmatpush1.msra.mxu0 %v99
    %217 = vmatprep.subr.mxu0 0.0
    %218 = vmatpush1.msra.mxu0 %v100
    %219 = vmatprep.subr.mxu0 0.0
    %220 = vmatpush1.msra.mxu0 %v101
    %221 = vmatprep.subr.mxu0 0.0
    %222 = vmatpush1.msra.mxu0 %v102
    %223 = vmatprep.subr.mxu0 0.0
    %224 = vmatpush1.msra.mxu0 %v103
    %225 = vmatprep.subr.mxu0 0.0
    %226 = vmatpush1.msra.mxu0 %v104
    %227 = vmatprep.subr.mxu0 0.0
    %228 = vmatpush1.msra.mxu0 %v105
    %229 = vmatprep.subr.mxu0 0.0
    %230 = vmatpush1.msra.mxu0 %v106
    %231 = vmatprep.subr.mxu0 0.0
    %232 = vmatpush1.msra.mxu0 %v107
    %233 = vmatprep.subr.mxu0 0.0
    %234 = vmatpush1.msra.mxu0 %v108
    %235 = vmatprep.subr.mxu0 0.0
    %236 = vmatpush1.msra.mxu0 %v109
    %237 = vmatprep.subr.mxu0 0.0
    %238 = vmatpush1.msra.mxu0 %v110
    %239 = vmatprep.subr.mxu0 0.0
    %240 = vmatpush1.msra.mxu0 %v111
    %241 = vmatprep.subr.mxu0 0.0
    %242 = vmatpush1.msra.mxu0 %v112
    %243 = vmatprep.subr.mxu0 0.0
    %244 = vmatpush1.msra.mxu0 %v113
    %245 = vmatprep.subr.mxu0 0.0
    %246 = vmatpush1.msra.mxu0 %v114
    %247 = vmatprep.subr.mxu0 0.0
    %248 = vmatpush1.msra.mxu0 %v115
    %249 = vmatprep.subr.mxu0 0.0
    %250 = vmatpush1.msra.mxu0 %v116
    %251 = vmatprep.mubr.f32.mxu0 %v52
    %252 = vmatmul.mubr.f32.gmra.mrb[0].mxu0 %v46
    %v253 = vpop.f32.mrb[0].mxu0
    %v254 = vadd.f32 %v184, %v253
    %v255 = vpop.f32.mrb[0].mxu0
    %256 = vdwg.mxu0
    %257 = vst [vmem:[#allocation5] sm:$0xff] %v254
    // Predicated region
    $region14: #{tpu_custom_call.1} parent=1 // pred_check
      _
    $region15: #{tpu_custom_call.1} parent=1 // pred_check_branch
      %259 = sbr.rel (0) target = $region17
    $region16: #{tpu_custom_call.1} parent=1 // pred_region
      %s261 = ssub.s32 128, 128
      %262 = vsyncadd [#allocation4], %s261
      %s264 = sshll.u32 [#allocation5], 4
      %s265 = int_to_ptr.vmem [resolvable:$true] %s264
      %267 = dma.vmem_to_hbm [thread:$0]  %s265, 128, %s2, [#allocation4]
    $region17: #{tpu_custom_call.1} parent=1 // pred_fallthru
      _
    // Predicated region
    $region18: #{tpu_custom_call.1} parent=1 // pred_check
      _
    $region19: #{tpu_custom_call.1} parent=1 // pred_check_branch
      %269 = sbr.rel (0) target = $region21
    $region20: #{tpu_custom_call.1} parent=1 // pred_region
      %270 = dma.done [#allocation4], 128
    $region21: #{tpu_custom_call.1} parent=1 // pred_fallthru
      _
    %271 = vsyncpa [#allocation3], 1
    %272 = vsyncpa [#allocation4], 1

</llo_original>
